<compile_context>
chip_gen: v7x
topology: tpu7x:2x2x1
jax: 0.10.0
libtpu: 0.0.40
codegen_flags: <defaults>
</compile_context>

<pallas_src>
import functools
import math

import jax
import jax.numpy as jnp
from jax.experimental import pallas as pl
from jax.experimental.pallas import tpu as pltpu

_LANE = 128
_MAX_TILE_ROWS = 2048  # 2048 x 128 x 4B = 1 MiB per f32 tile


def _round_up(a: int, b: int) -> int:
    return ((a + b - 1) // b) * b


def _mix_u32(x):
    """murmur3 finalizer: uint32 -> well-mixed uint32 (fixed shifts only)."""
    x = x ^ (x >> 16)
    x = x * jnp.uint32(0x7FEB352D)
    x = x ^ (x >> 15)
    x = x * jnp.uint32(0x846CA68B)
    x = x ^ (x >> 16)
    return x


def _bits_to_unit(bits_u32):
    """uint32 bits -> float32 uniform in [0, 1) using the top 24 bits."""
    b24 = (bits_u32 >> 8).astype(jnp.int32)  # < 2^24, exact in f32
    return b24.astype(jnp.float32) * jnp.float32(1.0 / 16777216.0)


def _additive_normal_noise_kernel(
    seed_ref, x_ref, o_ref, *, noise_mean, noise_std, h1, h2
):
    lane = x_ref.shape[-1]  # 128

    # Per-(u1,u2)-pair counter, unique across tiles/rows/lanes.
    # Scalar tile offset hoisted to the scalar unit; vector part is shift+or.
    # (int32 wraps for >2^31 pairs; acceptable for noise injection.)
    tile_base = pl.program_id(0) * (h1 * lane)  # scalar int32
    row_i = jax.lax.broadcasted_iota(jnp.int32, (h1, lane), 0)
    col_i = jax.lax.broadcasted_iota(jnp.int32, (h1, lane), 1)
    pair_id = tile_base + ((row_i << 7) | col_i)
    base = (pair_id ^ seed_ref[0]).astype(jnp.uint32)

    bits1 = _mix_u32(base)
    bits2 = _mix_u32(bits1 ^ jnp.uint32(0x9E3779B9))  # chained -> decorrelated

    u1 = 1.0 - _bits_to_unit(bits1)  # (0, 1]  -> log() safe
    u2 = _bits_to_unit(bits2)        # [0, 1)

    # Box-Muller: one (u1, u2) pair -> two independent standard normals.
    r = jnp.sqrt(-2.0 * jnp.log(u1))
    theta = jnp.float32(2.0 * math.pi) * u2
    c = jnp.cos(theta)
    # sin(theta) from cos: sign is + for theta in [0, pi)  <=>  u2 < 0.5.
    s = jnp.sqrt(jnp.maximum(jnp.float32(0.0), 1.0 - c * c))
    s = jnp.where(u2 < 0.5, s, -s)

    mean = jnp.float32(noise_mean)
    std = jnp.float32(noise_std)

    # Half-tile fused add+store (no concat, no full-tile f32 intermediate).
    z1 = r * c
    o_ref[pl.ds(0, h1), :] = (
        x_ref[pl.ds(0, h1), :].astype(jnp.float32) + (mean + std * z1)
    ).astype(o_ref.dtype)

    if h2 > 0:
        z2 = r * s
        o_ref[pl.ds(h1, h2), :] = (
            x_ref[pl.ds(h1, h2), :].astype(jnp.float32) + (mean + std * z2[:h2])
        ).astype(o_ref.dtype)


def additive_normal_noise(x, seed, noise_mean: float = 0.0, noise_std: float = 1.0):
    """out = x + N(noise_mean, noise_std), elementwise, for any-rank x."""
    orig_shape = x.shape
    total = x.size
    flat = x.reshape(-1)

    # Lane-dense layout: rows of 128 lanes. Row padding is never materialized
    # (ragged last row-block is handled by the cdiv grid + masked stores);
    # lane padding only when total is not a multiple of 128.
    rows = -(-total // _LANE)  # ceil
    pad = rows * _LANE - total
    if pad:
        # TODO(synk): handle the <128-element lane tail in-kernel to avoid
        # this extra HBM copy for non-multiple-of-128 sizes.
        flat = jnp.pad(flat, (0, pad))
    x2 = flat.reshape(rows, _LANE)

    # Tile selection:
    #  * rows <= 64: single full-extent block (block row dim == array rows).
    #  * otherwise: multiple-of-32 rows (bf16-aligned half tiles), capped at
    #    _MAX_TILE_ROWS, and chosen so the grid has >= 2 tiles (v7x megacore).
    if rows <= 64:
        tile_rows = rows
    else:
        tile_rows = min(_MAX_TILE_ROWS, _round_up(-(-rows // 2), 32))
    num_tiles = pl.cdiv(rows, tile_rows)
    h1 = (tile_rows + 1) // 2
    h2 = tile_rows - h1

    seed_arr = jnp.asarray([seed], dtype=jnp.int32)

    kernel = functools.partial(
        _additive_normal_noise_kernel,
        noise_mean=float(noise_mean),
        noise_std=float(noise_std),
        h1=h1,
        h2=h2,
    )

    out2 = pl.pallas_call(
        kernel,
        out_shape=jax.ShapeDtypeStruct((rows, _LANE), x2.dtype),
        grid=(num_tiles,),
        in_specs=[
            pl.BlockSpec(memory_space=pltpu.SMEM),               # seed scalar
            pl.BlockSpec((tile_rows, _LANE), lambda i: (i, 0)),  # input tile
        ],
        out_specs=pl.BlockSpec((tile_rows, _LANE), lambda i: (i, 0)),
        compiler_params=pltpu.CompilerParams(
            dimension_semantics=("parallel",),   # independent row tiles
            vmem_limit_bytes=32 * 1024 * 1024,   # headroom for 1 MiB tiles (v5e default is 16 MiB)
        ),
    )(seed_arr, x2)

    if pad:
        return out2.reshape(-1)[:total].reshape(orig_shape)
    return out2.reshape(orig_shape)


if __name__ == "__main__":
    key = jax.random.PRNGKey(0)
    x = jax.random.normal(key, (2, 4, 16, 16), dtype=jnp.float32)  # NCHW

    noise_mean, noise_std = 0.5, 2.0
    out = additive_normal_noise(x, seed=1234, noise_mean=noise_mean, noise_std=noise_std)
    out = jax.block_until_ready(out)

    # Sanity checks: shape/dtype preserved, noise statistics roughly correct.
    assert out.shape == x.shape and out.dtype == x.dtype
    noise = out - x
    emp_mean = float(jnp.mean(noise))
    emp_std = float(jnp.std(noise))
    assert abs(emp_mean - noise_mean) < 0.25, (emp_mean, noise_mean)
    assert abs(emp_std - noise_std) < 0.5, (emp_std, noise_std)

    print("KERNEL_OK")
</pallas_src>

<mosaic_0001>
module attributes {stable_mosaic.version = 11 : i64} {
  func.func @_additive_normal_noise_kernel(%arg0: i32, %arg1: memref<1xi32, #tpu.memory_space<smem>>, %arg2: memref<16x128xf32, #tpu.memory_space<vmem>>, %arg3: memref<16x128xf32, #tpu.memory_space<vmem>>) attributes {dimension_semantics = [#tpu.dimension_semantics<parallel>], iteration_bounds = array<i64: 1>, scalar_prefetch = 0 : i64, scratch_operands = 0 : i64, tpu.core_type = #tpu.core_type<tc>, window_params = [{transform_indices = @transform_0, window_bounds = array<i64: 1>}, {transform_indices = @transform_1, window_bounds = array<i64: 16, 128>}, {transform_indices = @transform_2, window_bounds = array<i64: 16, 128>}]} {
    %c1024_i32 = arith.constant 1024 : i32
    %0 = arith.muli %arg0, %c1024_i32 : i32
    %1 = tpu.iota {dimensions = array<i32: 0>} : vector<8x128xi32>
    %2 = tpu.iota {dimensions = array<i32: 1>} : vector<8x128xi32>
    %c7_i32 = arith.constant 7 : i32
    %3 = vector.broadcast %c7_i32 : i32 to vector<8x128xi32>
    %4 = arith.shli %1, %3 : vector<8x128xi32>
    %5 = arith.ori %4, %2 : vector<8x128xi32>
    %6 = vector.broadcast %0 : i32 to vector<8x128xi32>
    %7 = arith.addi %6, %5 : vector<8x128xi32>
    %c0 = arith.constant 0 : index
    %8 = memref.load %arg1[%c0] : memref<1xi32, #tpu.memory_space<smem>>
    %9 = vector.broadcast %8 : i32 to vector<8x128xi32>
    %10 = arith.xori %7, %9 : vector<8x128xi32>
    %c16_i32 = arith.constant 16 : i32
    %11 = vector.broadcast %c16_i32 : i32 to vector<8x128xi32>
    %12 = arith.shrui %10, %11 : vector<8x128xi32>
    %13 = arith.xori %10, %12 : vector<8x128xi32>
    %c2146121005_i32 = arith.constant 2146121005 : i32
    %14 = vector.broadcast %c2146121005_i32 : i32 to vector<8x128xi32>
    %15 = arith.muli %13, %14 : vector<8x128xi32>
    %c15_i32 = arith.constant 15 : i32
    %16 = vector.broadcast %c15_i32 : i32 to vector<8x128xi32>
    %17 = arith.shrui %15, %16 : vector<8x128xi32>
    %18 = arith.xori %15, %17 : vector<8x128xi32>
    %c-2073254261_i32 = arith.constant -2073254261 : i32
    %19 = vector.broadcast %c-2073254261_i32 : i32 to vector<8x128xi32>
    %20 = arith.muli %18, %19 : vector<8x128xi32>
    %c16_i32_0 = arith.constant 16 : i32
    %21 = vector.broadcast %c16_i32_0 : i32 to vector<8x128xi32>
    %22 = arith.shrui %20, %21 : vector<8x128xi32>
    %23 = arith.xori %20, %22 : vector<8x128xi32>
    %c-1640531527_i32 = arith.constant -1640531527 : i32
    %24 = vector.broadcast %c-1640531527_i32 : i32 to vector<8x128xi32>
    %25 = arith.xori %23, %24 : vector<8x128xi32>
    %c16_i32_1 = arith.constant 16 : i32
    %26 = vector.broadcast %c16_i32_1 : i32 to vector<8x128xi32>
    %27 = arith.shrui %25, %26 : vector<8x128xi32>
    %28 = arith.xori %25, %27 : vector<8x128xi32>
    %c2146121005_i32_2 = arith.constant 2146121005 : i32
    %29 = vector.broadcast %c2146121005_i32_2 : i32 to vector<8x128xi32>
    %30 = arith.muli %28, %29 : vector<8x128xi32>
    %c15_i32_3 = arith.constant 15 : i32
    %31 = vector.broadcast %c15_i32_3 : i32 to vector<8x128xi32>
    %32 = arith.shrui %30, %31 : vector<8x128xi32>
    %33 = arith.xori %30, %32 : vector<8x128xi32>
    %c-2073254261_i32_4 = arith.constant -2073254261 : i32
    %34 = vector.broadcast %c-2073254261_i32_4 : i32 to vector<8x128xi32>
    %35 = arith.muli %33, %34 : vector<8x128xi32>
    %c16_i32_5 = arith.constant 16 : i32
    %36 = vector.broadcast %c16_i32_5 : i32 to vector<8x128xi32>
    %37 = arith.shrui %35, %36 : vector<8x128xi32>
    %38 = arith.xori %35, %37 : vector<8x128xi32>
    %c8_i32 = arith.constant 8 : i32
    %39 = vector.broadcast %c8_i32 : i32 to vector<8x128xi32>
    %40 = arith.shrui %23, %39 : vector<8x128xi32>
    %41 = arith.sitofp %40 : vector<8x128xi32> to vector<8x128xf32>
    %cst = arith.constant 5.96046448E-8 : f32
    %42 = vector.broadcast %cst : f32 to vector<8x128xf32>
    %43 = arith.mulf %41, %42 : vector<8x128xf32>
    %cst_6 = arith.constant 1.000000e+00 : f32
    %44 = vector.broadcast %cst_6 : f32 to vector<8x128xf32>
    %45 = arith.subf %44, %43 : vector<8x128xf32>
    %c8_i32_7 = arith.constant 8 : i32
    %46 = vector.broadcast %c8_i32_7 : i32 to vector<8x128xi32>
    %47 = arith.shrui %38, %46 : vector<8x128xi32>
    %48 = arith.sitofp %47 : vector<8x128xi32> to vector<8x128xf32>
    %cst_8 = arith.constant 5.96046448E-8 : f32
    %49 = vector.broadcast %cst_8 : f32 to vector<8x128xf32>
    %50 = arith.mulf %48, %49 : vector<8x128xf32>
    %51 = math.log %45 : vector<8x128xf32>
    %cst_9 = arith.constant -2.000000e+00 : f32
    %52 = vector.broadcast %cst_9 : f32 to vector<8x128xf32>
    %53 = arith.mulf %52, %51 : vector<8x128xf32>
    %54 = math.sqrt %53 : vector<8x128xf32>
    %cst_10 = arith.constant 6.28318548 : f32
    %55 = vector.broadcast %cst_10 : f32 to vector<8x128xf32>
    %56 = arith.mulf %55, %50 : vector<8x128xf32>
    %57 = math.cos %56 : vector<8x128xf32>
    %58 = arith.mulf %57, %57 : vector<8x128xf32>
    %cst_11 = arith.constant 1.000000e+00 : f32
    %59 = vector.broadcast %cst_11 : f32 to vector<8x128xf32>
    %60 = arith.subf %59, %58 : vector<8x128xf32>
    %cst_12 = arith.constant 0.000000e+00 : f32
    %61 = vector.broadcast %cst_12 : f32 to vector<8x128xf32>
    %62 = arith.maximumf %61, %60 : vector<8x128xf32>
    %63 = math.sqrt %62 : vector<8x128xf32>
    %cst_13 = arith.constant 5.000000e-01 : f32
    %64 = vector.broadcast %cst_13 : f32 to vector<8x128xf32>
    %65 = arith.cmpf olt, %50, %64 : vector<8x128xf32>
    %cst_14 = arith.constant 0.000000e+00 : f32
    %66 = vector.broadcast %cst_14 : f32 to vector<8x128xf32>
    %67 = arith.subf %66, %63 : vector<8x128xf32>
    %68 = arith.select %65, %63, %67 : vector<8x128xi1>, vector<8x128xf32>
    %69 = arith.mulf %54, %57 : vector<8x128xf32>
    %c0_15 = arith.constant 0 : index
    %c0_16 = arith.constant 0 : index
    %70 = vector.load %arg2[%c0_15, %c0_16] : memref<16x128xf32, #tpu.memory_space<vmem>>, vector<8x128xf32>
    %cst_17 = arith.constant 2.000000e+00 : f32
    %71 = vector.broadcast %cst_17 : f32 to vector<8x128xf32>
    %72 = arith.mulf %71, %69 : vector<8x128xf32>
    %cst_18 = arith.constant 5.000000e-01 : f32
    %73 = vector.broadcast %cst_18 : f32 to vector<8x128xf32>
    %74 = arith.addf %73, %72 : vector<8x128xf32>
    %75 = arith.addf %70, %74 : vector<8x128xf32>
    %c0_19 = arith.constant 0 : index
    %c0_20 = arith.constant 0 : index
    %76 = vector.load %arg3[%c0_19, %c0_20] : memref<16x128xf32, #tpu.memory_space<vmem>>, vector<8x128xf32>
    tpu.vector_store %arg3[%c0_19, %c0_20], %75 {strides = array<i32>} : memref<16x128xf32, #tpu.memory_space<vmem>>, vector<8x128xf32>,
    %77 = arith.mulf %54, %68 : vector<8x128xf32>
    %c8 = arith.constant 8 : index
    %c0_21 = arith.constant 0 : index
    %78 = vector.load %arg2[%c8, %c0_21] : memref<16x128xf32, #tpu.memory_space<vmem>>, vector<8x128xf32>
    %cst_22 = arith.constant 2.000000e+00 : f32
    %79 = vector.broadcast %cst_22 : f32 to vector<8x128xf32>
    %80 = arith.mulf %79, %77 : vector<8x128xf32>
    %cst_23 = arith.constant 5.000000e-01 : f32
    %81 = vector.broadcast %cst_23 : f32 to vector<8x128xf32>
    %82 = arith.addf %81, %80 : vector<8x128xf32>
    %83 = arith.addf %78, %82 : vector<8x128xf32>
    %c8_24 = arith.constant 8 : index
    %c0_25 = arith.constant 0 : index
    %84 = vector.load %arg3[%c8_24, %c0_25] : memref<16x128xf32, #tpu.memory_space<vmem>>, vector<8x128xf32>
    tpu.vector_store %arg3[%c8_24, %c0_25], %83 {strides = array<i32>} : memref<16x128xf32, #tpu.memory_space<vmem>>, vector<8x128xf32>,
    return
  }
  func.func @transform_0(%arg0: i32) -> i32 {
    %c0_i32 = arith.constant 0 : i32
    %c0_i32_0 = arith.constant 0 : i32
    return %c0_i32 : i32
  }
  func.func @transform_1(%arg0: i32) -> (i32, i32) {
    %c0_i32 = arith.constant 0 : i32
    %c0_i32_0 = arith.constant 0 : i32
    return %arg0, %c0_i32 : i32, i32
  }
  func.func @transform_2(%arg0: i32) -> (i32, i32) {
    %c0_i32 = arith.constant 0 : i32
    %c0_i32_0 = arith.constant 0 : i32
    return %arg0, %c0_i32 : i32, i32
  }
}

</mosaic_0001>

<llo_original>
// kernel: tpu_custom_call.1
$region0: #{tpu_custom_call.1}
  #allocation0 [shape = 'u32[]', space=smem, size = 0x4, offset = 0x4, fixed_abs, tag = 'smem constant byte address 0x4 - core index']
  #allocation1 [shape = 'u32[144,128]{1,0:T(1,128)}', space=vmem, size = 0x12000, scoped, tag = 'internal scratch']
  #allocation2 [shape = 's32[1]{0:T(128)S(6)}', space=smem, size = 0x200, scoped, tag = 'scoped memory for tpu_custom_call.1']
  %s0 = inlined_call_operand.<no memory space> [shape: s32[1], index: 0, kind: input, shape index: {}]
  %s1 = inlined_call_operand.hbm [shape: f32[16,128], index: 1, kind: input, shape index: {}]
  %s2 = inlined_call_operand.hbm [shape: f32[16,128], index: 2, kind: output, shape index: {}]
  %s3 = sld [smem:[#allocation0]]
  $region22: #{tpu_custom_call.1} parent=0
    _
  %s5 = ssub.s32 1, %s3
  %s6 = scalar_select 0, %s5, %s3
  %7 = sst [smem:[#allocation2]] %s0
  $region1: #{tpu_custom_call.1} parent=0
    #allocation3 [shape = 'u8[8192]{0}', space=vmem, size = 0x2000, scoped, tag = 'input window, operand 1, single buffered']
    #allocation4 [shape = 's32[1]{0}', space=sflag, size = 0x4, scoped, tag = 'scoped memory for tpu_custom_call.1']
    #allocation5 [shape = 's32[1]{0}', space=sflag, size = 0x4, scoped, tag = 'scoped memory for tpu_custom_call.1']
    #allocation6 [shape = 'u8[8192]{0}', space=vmem, size = 0x2000, scoped, tag = 'output window, operand 0, single buffered']
    %8 = vsyncpa [#allocation4], 0
    %9 = vsyncpa [#allocation5], 0
    // Predicated region
    $region2: #{tpu_custom_call.1} parent=1 // pred_check
      _
    $region3: #{tpu_custom_call.1} parent=1 // pred_check_branch
      %11 = sbr.rel (0) target = $region5
    $region4: #{tpu_custom_call.1} parent=1 // pred_region
      _
    $region5: #{tpu_custom_call.1} parent=1 // pred_fallthru
      _
    // Predicated region
    $region6: #{tpu_custom_call.1} parent=1 // pred_check
      _
    $region7: #{tpu_custom_call.1} parent=1 // pred_check_branch
      %13 = sbr.rel (0) target = $region9
    $region8: #{tpu_custom_call.1} parent=1 // pred_region
      %s15 = ssub.s32 256, 256
      %16 = vsyncadd [#allocation4], %s15
      %s17 = sshll.u32 [#allocation3], 4
      %s18 = int_to_ptr.vmem [resolvable:$true] %s17
      %23 = dma.hbm_to_vmem [thread:$0]  %s1, 256, %s18, [#allocation4], 128, 128, 8
    $region9: #{tpu_custom_call.1} parent=1 // pred_fallthru
      _
    // Predicated region
    $region10: #{tpu_custom_call.1} parent=1 // pred_check
      _
    $region11: #{tpu_custom_call.1} parent=1 // pred_check_branch
      %25 = sbr.rel (0) target = $region13
    $region12: #{tpu_custom_call.1} parent=1 // pred_region
      %26 = dma.done [#allocation4], 256
    $region13: #{tpu_custom_call.1} parent=1 // pred_fallthru
      _
    %s27 = smul.u32 0, 1024
    %v28 = vlaneseq
    %v29 = vshrl.u32 %v28, 7
    %v30 = vlaneseq
    %v31 = vand.u32 %v30, 127
    %v32 = vshll.u32 %v29, 7
    %v33 = vor.u32 %v32, %v31
    %v34 = vstv %s27
    %v35 = vadd.s32 %v34, %v33
    %s36 = sld [smem:[#allocation2]]
    %v37 = vstv %s36
    %v38 = vxor.u32 %v35, %v37
    %v39 = vshrl.u32 %v38, 16
    %v40 = vxor.u32 %v38, %v39
    %v41 = vmul.u32 %v40, 2146121005
    %v42 = vshrl.u32 %v41, 15
    %v43 = vxor.u32 %v41, %v42
    %v44 = vmul.u32 %v43, 2221713035
    %v45 = vshrl.u32 %v44, 16
    %v46 = vxor.u32 %v44, %v45
    %v47 = vxor.u32 %v46, 2654435769
    %v48 = vshrl.u32 %v47, 16
    %v49 = vxor.u32 %v47, %v48
    %v50 = vmul.u32 %v49, 2146121005
    %v51 = vshrl.u32 %v50, 15
    %v52 = vxor.u32 %v50, %v51
    %v53 = vmul.u32 %v52, 2221713035
    %v54 = vshrl.u32 %v53, 16
    %v55 = vxor.u32 %v53, %v54
    %v56 = vshrl.u32 %v46, 8
    %v57 = vcvt.s32.f32 %v56
    %v58 = vmul.f32 %v57, 5.9604645e-08
    %v59 = vsub.f32 1.0, %v58
    %v60 = vshrl.u32 %v55, 8
    %v61 = vcvt.s32.f32 %v60
    %v62 = vmul.f32 %v61, 5.9604645e-08
    %v63 = vlog2.pop %v59
    %v64 = vmul.f32 %v63, 0.6931472
    %v65 = vmul.f32 %v64, -2.0
    %v66 = vrsqrt.pop %v65
    %v67 = vmul.f32 %v65, %v66
    %vm68 = vcmp.eq.f32.partialorder %v65, inf
    %v69 = vsel %vm68, %v65, %v67
    %vm70 = vcmp.eq.f32.partialorder %v65, 0.0
    %v71 = vand.u32 %v65, 2147483648
    %v72 = vsel %vm70, %v71, %v69
    %v73 = vmul.f32 %v62, 6.2831855
    %v74 = vand.u32 2147483647, %v73
    %vm75 = vcmp.le.f32.partialorder %v74, 0.7853982
    %vm76 = vcmp.lt.s32.totalorder %v73, 0
    %v77 = vand.u32 %v73, 2139095040
    %v78 = vshrl.u32 %v77, 23
    %v79 = vsub.s32 %v78, 127
    %v80 = vand.u32 2147483647, %v73
    %v81 = vand.u32 %v80, 8388607
    %v82 = vor.u32 %v81, 8388608
    %v83 = vsub.s32 0, %v82
    %v84 = vadd.s32 %v79, 1
    %vm85 = vcmp.gt.s32.totalorder %v84, 0
    %v86 = vsel %vm85, %v84, 0
    %v87 = vshrl.u32 %v86, 5
    %v88 = vand.u32 %v86, 31
    %v89 = vsub.s32 32, %v88
    %v90 = vshrl.u32 683565275, %v89
    %v91 = vshll.u32 683565275, %v88
    %v92 = vshrl.u32 2475754826, %v89
    %v93 = vor.u32 %v91, %v92
    %v94 = vshll.u32 2475754826, %v88
    %v95 = vshrl.u32 2131351028, %v89
    %v96 = vor.u32 %v94, %v95
    %v97 = vshll.u32 2131351028, %v88
    %v98 = vshrl.u32 2102212464, %v89
    %v99 = vor.u32 %v97, %v98
    %v100 = vshll.u32 2102212464, %v88
    %v101 = vshrl.u32 920167782, %v89
    %v102 = vor.u32 %v100, %v101
    %v103 = vshll.u32 920167782, %v88
    %v104 = vshrl.u32 1326507024, %v89
    %v105 = vor.u32 %v103, %v104
    %vm106 = vcmp.lt.s32.totalorder %v87, 1
    %vm107 = vcmp.lt.s32.totalorder %v87, 2
    %vm108 = vcmp.lt.s32.totalorder %v87, 3
    %vm109 = vcmp.lt.s32.totalorder %v87, 4
    %v110 = vsel %vm106, %v90, %v93
    %v111 = vsel %vm109, %v99, 2102212464
    %v112 = vsel %vm108, %v96, %v111
    %v113 = vsel %vm107, %v110, %v112
    %v114 = vsel %vm106, %v93, %v96
    %v115 = vsel %vm109, %v102, 920167782
    %v116 = vsel %vm108, %v99, %v115
    %v117 = vsel %vm107, %v114, %v116
    %v118 = vsel %vm106, %v96, %v99
    %v119 = vsel %vm109, %v105, 1326507024
    %v120 = vsel %vm108, %v102, %v119
    %v121 = vsel %vm107, %v118, %v120
    %v122 = vshll.u32 %v82, 8
    %v123 = vmul.u32.u64.compose %v122, %v121
    %v124 = vextract.low.u32 %v123
    %v125 = vextract.high.u32 %v123
    %v126 = vmul.u32.u64.compose %v122, %v117
    %v127 = vextract.low.u32 %v126
    %v128 = vextract.high.u32 %v126
    %v129 = vmul.u32 %v122, %v113
    %v130 = vadd.s32 %v125, %v127
    %vm131 = vc.u32 %v125, %v127
    %v132 = vadd.s32 %v128, 1
    %v133 = vsel %vm131, %v132, %v128
    %v134 = vadd.s32 %v129, %v133
    %v135 = vadd.s32 %v134, 536870912
    %v136 = vshrl.u32 %v135, 30
    %v137 = vshll.u32 %v136, 30
    %v138 = vsub.s32 %v134, %v137
    %vm139 = vcmp.lt.s32.totalorder %v138, 0
    %v140 = vsub.s32 0, %v138
    %v141 = vsel %vm139, %v140, %v138
    %v142 = vclz %v141
    %v143 = vsub.s32 %v142, 2
    %vm144 = vcmp.gt.s32.totalorder 0, %v143
    %v145 = vsel %vm144, 0, %v143
    %v146 = vsub.s32 32, %v145
    %v147 = vshll.u32 %v138, %v145
    %v148 = vshrl.u32 %v130, %v146
    %v149 = vor.u32 %v147, %v148
    %v150 = vsub.s32 4294967266, %v145
    %v151 = vadd.s32 %v150, 127
    %v152 = vshll.u32 %v151, 23
    %v153 = vor.u32 4788187, %v152
    %v154 = vand.u32 2147483647, %v153
    %v156 = vcvt.s32.f32 %v149
    %v157 = vmul.f32 %v156, %v154
    %v158 = vxor.u32 %v157, 2147483648
    %v159 = vsel %vm76, %v158, %v157
    %v160 = vsub.s32 4, %v136
    %v161 = vsel %vm76, %v160, %v136
    %v162 = vsel %vm75, %v73, %v159
    %v163 = vsel %vm75, 0, %v161
    %v164 = vcosq.f32.pop %v162
    %v165 = vsinq.f32.pop %v162
    %vm166 = vweird.f32 %v73
    %v167 = vand.u32 %v163, 3
    %vm168 = vcmp.lt.s32.totalorder %v167, 2
    %vm169 = vcmp.eq.s32.totalorder %v167, 0
    %v170 = vxor.u32 %v165, 2147483648
    %v171 = vsel %vm169, %v164, %v170
    %vm172 = vcmp.eq.s32.totalorder %v167, 2
    %v173 = vxor.u32 %v164, 2147483648
    %v174 = vsel %vm172, %v173, %v165
    %v175 = vsel %vm168, %v171, %v174
    %v176 = vsel %vm166, nan, %v175
    %v177 = vmul.f32 %v176, %v176
    %v178 = vsub.f32 1.0, %v177
    %v179 = vmax.f32 %v178, 0.0
    %v180 = vrsqrt.pop %v179
    %v181 = vmul.f32 %v179, %v180
    %vm182 = vcmp.eq.f32.partialorder %v179, inf
    %v183 = vsel %vm182, %v179, %v181
    %vm184 = vcmp.eq.f32.partialorder %v179, 0.0
    %v185 = vand.u32 %v179, 2147483648
    %v186 = vsel %vm184, %v185, %v183
    %vm187 = vcmp.lt.f32.partialorder %v62, 0.5
    %v188 = vsub.f32 0.0, %v186
    %v189 = vsel %vm187, %v186, %v188
    %v190 = vmul.f32 %v72, %v176
    %v191 = vld [vmem:[#allocation3] sm:$0xff]
    %v192 = vmul.f32 %v190, 2.0
    %v193 = vadd.f32 %v192, 0.5
    %v194 = vadd.f32 %v191, %v193
    %195 = vst [vmem:[#allocation6] sm:$0xff] %v194
    %v196 = vmul.f32 %v72, %v189
    %v197 = vld [vmem:[#allocation3 + $0x8] sm:$0xff]
    %v198 = vmul.f32 %v196, 2.0
    %v199 = vadd.f32 %v198, 0.5
    %v200 = vadd.f32 %v197, %v199
    %201 = vst [vmem:[#allocation6 + $0x8] sm:$0xff] %v200
    // Predicated region
    $region14: #{tpu_custom_call.1} parent=1 // pred_check
      _
    $region15: #{tpu_custom_call.1} parent=1 // pred_check_branch
      %203 = sbr.rel (0) target = $region17
    $region16: #{tpu_custom_call.1} parent=1 // pred_region
      %s205 = ssub.s32 256, 256
      %206 = vsyncadd [#allocation5], %s205
      %s207 = sshll.u32 [#allocation6], 4
      %s208 = int_to_ptr.vmem [resolvable:$true] %s207
      %213 = dma.vmem_to_hbm [thread:$0]  %s208, 256, %s2, [#allocation5], 128, 128, 8
    $region17: #{tpu_custom_call.1} parent=1 // pred_fallthru
      _
    // Predicated region
    $region18: #{tpu_custom_call.1} parent=1 // pred_check
      _
    $region19: #{tpu_custom_call.1} parent=1 // pred_check_branch
      %215 = sbr.rel (0) target = $region21
    $region20: #{tpu_custom_call.1} parent=1 // pred_region
      %216 = dma.done [#allocation5], 256
    $region21: #{tpu_custom_call.1} parent=1 // pred_fallthru
      _
    %217 = vsyncpa [#allocation4], 1
    %218 = vsyncpa [#allocation5], 1

</llo_original>
